<compile_context>
chip_gen: v5e
topology: v5e:2x2
jax: 0.10.0
libtpu: 0.0.40
codegen_flags: <defaults>
</compile_context>

<pallas_src>
import functools

import jax
import jax.numpy as jnp
from jax.experimental import pallas as pl
from jax.experimental.pallas import tpu as pltpu

LN_EPS = 1e-5  # PyTorch nn.LayerNorm default


def _round_up(n, m):
    return ((n + m - 1) // m) * m


def patch_embed_kernel(x_ref, w_ref, bias_ref, g2_ref, b2_ref, o_ref):
    # x_ref:    (TILE_M, PD) bf16 -- tile of flattened (B*NP) rows
    # w_ref:    (PD, E)      bf16 -- g1-scaled, row-permuted W^T
    # bias_ref: (1, E) f32        -- bias + b1 @ W^T (LN1 affine folded in)
    # g2_ref/b2_ref: (1, E) f32   -- LN2 affine
    x = x_ref[...].astype(jnp.float32)

    # LayerNorm over patch_dim (two-pass stats; gamma/beta folded into w/bias).
    mu = jnp.mean(x, axis=-1, keepdims=True)
    xc = x - mu
    var = jnp.mean(xc * xc, axis=-1, keepdims=True)
    z = xc * jax.lax.rsqrt(var + LN_EPS)                       # (TILE_M, PD)

    # Linear on the MXU: bf16 inputs, f32 accumulation.
    y = jnp.dot(z.astype(jnp.bfloat16), w_ref[...],
                preferred_element_type=jnp.float32) + bias_ref[...]

    # LayerNorm over emb_size (full affine), f32 on the VPU.
    mu2 = jnp.mean(y, axis=-1, keepdims=True)
    yc = y - mu2
    var2 = jnp.mean(yc * yc, axis=-1, keepdims=True)
    yn = yc * jax.lax.rsqrt(var2 + LN_EPS) * g2_ref[...] + b2_ref[...]
    o_ref[...] = yn.astype(o_ref.dtype)


def _feature_perm(channels, patch_size):
    # perm[f_new] = f_orig, where
    #   f_orig = p1*(P*C) + p2*C + c   -- module's '(p1 p2 c)' ordering
    #   f_new  = c*(P*P) + p1*P + p2   -- '(c p1 p2)' ordering used here
    P, C = patch_size, channels
    idx = jnp.arange(P * P * C).reshape(P, P, C)   # [p1, p2, c] -> f_orig
    return idx.transpose(2, 0, 1).reshape(-1)


def _row_tile(M):
    """Row-tile size: large enough to amortize ~0.35us/step pipeline overhead,
    multiple of 16 (bf16 sublane packing), and >=2 grid steps when M allows
    (keeps both v7x TensorCores busy via the 'parallel' grid axis)."""
    if M < 16:
        return _round_up(max(M, 1), 8)          # single block == full array
    target = 512
    n_steps = max(2, -(-M // target))           # ceil(M / target), at least 2
    return _round_up(-(-M // n_steps), 16)


@functools.partial(jax.jit, static_argnums=(2,))
def patch_embedding(x, params, patch_size):
    """x: (B, C, H, W) NCHW float32. Returns (B, num_patches, emb_size)."""
    g1, b1, W, bias, g2, b2 = params
    B, C, H, Wd = x.shape
    p = patch_size
    h, w = H // p, Wd // p
    NP = h * w
    PD = C * p * p
    E = W.shape[0]                                 # PyTorch Linear weight: (E, PD)
    out_dtype = x.dtype

    # Rearrange 'b c (h p1) (w p2) -> (b h w) (c p1 p2)'.  The '(c p1 p2)'
    # ordering keeps the innermost image axis contiguous (lane-friendly
    # transpose); LN1 params and the PD rows of W^T are permuted identically,
    # so the math matches the module's '(p1 p2 c)' ordering exactly.  Under
    # jit, allow_input_fusion lets XLA fuse this producer into the kernel's
    # input DMA instead of a separate HBM round trip.
    xp = x.reshape(B, C, h, p, w, p).transpose(0, 2, 4, 1, 3, 5)
    xp = xp.reshape(B * NP, PD).astype(jnp.bfloat16)   # bf16: halve the HBM stream

    perm = _feature_perm(C, p)
    wTp = W.T[perm]                                            # (PD, E), permuted rows
    # Fold LN1's affine into the Linear.
    w_fold = (g1[perm][:, None] * wTp).astype(jnp.bfloat16)    # (PD, E) bf16
    bias_fold = (b1[perm] @ wTp + bias).reshape(1, E).astype(jnp.float32)
    g2r = g2.reshape(1, E).astype(jnp.float32)
    b2r = b2.reshape(1, E).astype(jnp.float32)

    # Flatten rows, pick the row tile, pad up to a multiple of it.
    M = B * NP
    TILE_M = _row_tile(M)
    M_pad = _round_up(M, TILE_M)
    if M_pad != M:
        xp = jnp.pad(xp, ((0, M_pad - M), (0, 0)))
    grid = (M_pad // TILE_M,)

    const2d = lambda shape: pl.BlockSpec(shape, lambda i: (0, 0))

    flops = 2 * M_pad * PD * E
    bytes_accessed = (M_pad * PD * 2          # input rows (bf16)
                      + PD * E * 2            # folded weight (bf16)
                      + M_pad * E * 4         # output (f32)
                      + 4 * 3 * E)            # bias / ln2 gamma / ln2 beta

    out = pl.pallas_call(
        patch_embed_kernel,
        out_shape=jax.ShapeDtypeStruct((M_pad, E), out_dtype),
        grid_spec=pltpu.PrefetchScalarGridSpec(
            num_scalar_prefetch=0,
            grid=grid,
            in_specs=[
                pl.BlockSpec((TILE_M, PD), lambda i: (i, 0)),   # row tile (bf16)
                const2d((PD, E)),                               # g1-scaled W^T (bf16)
                const2d((1, E)),                                # folded bias
                const2d((1, E)),                                # ln2 gamma
                const2d((1, E)),                                # ln2 beta
            ],
            out_specs=pl.BlockSpec((TILE_M, E), lambda i: (i, 0)),
        ),
        compiler_params=pltpu.CompilerParams(
            dimension_semantics=("parallel",),
            vmem_limit_bytes=32 * 1024 * 1024,   # safe on v7x's 64 MiB VMEM
            allow_input_fusion=[True, False, False, False, False],
        ),
        cost_estimate=pl.CostEstimate(
            flops=flops, transcendentals=0, bytes_accessed=bytes_accessed),
    )(xp, w_fold, bias_fold, g2r, b2r)

    return out[:M].reshape(B, NP, E)


# ---------------------------------------------------------------------------
# Pure-JAX reference (follows the PyTorch module exactly, f32 matmul).
# ---------------------------------------------------------------------------
def rearrange_patches_ref(x, patch_size):
    # 'b c (h p1) (w p2) -> b (h w) (p1 p2 c)'
    B, C, H, W = x.shape
    p = patch_size
    h, w = H // p, W // p
    x = x.reshape(B, C, h, p, w, p)            # b c h p1 w p2
    x = x.transpose(0, 2, 4, 3, 5, 1)          # b h w p1 p2 c
    return x.reshape(B, h * w, p * p * C)      # b (h w) (p1 p2 c)


def patch_embedding_ref(x, params, patch_size):
    g1, b1, W, bias, g2, b2 = params

    def ln(v, g, b):
        mu = jnp.mean(v, axis=-1, keepdims=True)
        var = jnp.mean((v - mu) ** 2, axis=-1, keepdims=True)
        return (v - mu) * jax.lax.rsqrt(var + LN_EPS) * g + b

    xp = rearrange_patches_ref(x, patch_size)
    xn = ln(xp, g1, b1)
    y = jnp.einsum("bnd,ed->bne", xn, W) + bias
    return ln(y, g2, b2)


if __name__ == "__main__":
    # Small ViT-style config: image 16x16, 4 channels, patch 8, emb 128.
    B, C, IMG, P, E = 2, 4, 16, 8, 128
    NP = (IMG // P) * (IMG // P)          # 4 patches
    PD = C * P * P                        # 256

    key = jax.random.PRNGKey(0)
    kx, k1, k2, k3, k4, k5, k6 = jax.random.split(key, 7)

    x = jax.random.normal(kx, (B, C, IMG, IMG), dtype=jnp.float32)

    # Deterministic parameter init; shapes match nn.LayerNorm / nn.Linear.
    params = (
        1.0 + 0.1 * jax.random.normal(k1, (PD,), dtype=jnp.float32),        # ln1 gamma
        0.1 * jax.random.normal(k2, (PD,), dtype=jnp.float32),              # ln1 beta
        jax.random.normal(k3, (E, PD), dtype=jnp.float32) * (PD ** -0.5),   # Linear W
        0.1 * jax.random.normal(k4, (E,), dtype=jnp.float32),               # Linear b
        1.0 + 0.1 * jax.random.normal(k5, (E,), dtype=jnp.float32),         # ln2 gamma
        0.1 * jax.random.normal(k6, (E,), dtype=jnp.float32),               # ln2 beta
    )

    out = jax.block_until_ready(patch_embedding(x, params, P))
    ref = jax.block_until_ready(patch_embedding_ref(x, params, P))

    assert out.shape == (B, NP, E), out.shape
    # Tolerance covers bf16 activations/weights (f32-accumulated on the MXU).
    assert jnp.allclose(out, ref, atol=5e-2, rtol=5e-2), "mismatch vs reference"
    print("KERNEL_OK")
</pallas_src>

<mosaic_0001>
module attributes {stable_mosaic.version = 11 : i64} {
  func.func @patch_embed_kernel(%arg0: i32, %arg1: memref<8x256xbf16, #tpu.memory_space<vmem>>, %arg2: memref<256x128xbf16, #tpu.memory_space<vmem>>, %arg3: memref<1x128xf32, #tpu.memory_space<vmem>>, %arg4: memref<1x128xf32, #tpu.memory_space<vmem>>, %arg5: memref<1x128xf32, #tpu.memory_space<vmem>>, %arg6: memref<8x128xf32, #tpu.memory_space<vmem>>) attributes {dimension_semantics = [#tpu.dimension_semantics<parallel>], iteration_bounds = array<i64: 1>, scalar_prefetch = 0 : i64, scratch_operands = 0 : i64, tpu.core_type = #tpu.core_type<tc>, window_params = [{transform_indices = @transform_0, window_bounds = array<i64: 8, 256>}, {pipeline_mode = #tpu.pipeline_mode<synchronous>, transform_indices = @transform_1, window_bounds = array<i64: 256, 128>}, {pipeline_mode = #tpu.pipeline_mode<synchronous>, transform_indices = @transform_2, window_bounds = array<i64: 1, 128>}, {pipeline_mode = #tpu.pipeline_mode<synchronous>, transform_indices = @transform_3, window_bounds = array<i64: 1, 128>}, {pipeline_mode = #tpu.pipeline_mode<synchronous>, transform_indices = @transform_4, window_bounds = array<i64: 1, 128>}, {transform_indices = @transform_5, window_bounds = array<i64: 8, 128>}]} {
    %c0 = arith.constant 0 : index
    %c0_0 = arith.constant 0 : index
    %0 = vector.load %arg1[%c0, %c0_0] : memref<8x256xbf16, #tpu.memory_space<vmem>>, vector<8x256xbf16>
    %1 = arith.extf %0 : vector<8x256xbf16> to vector<8x256xf32>
    %cst = arith.constant dense<0.000000e+00> : vector<8xf32>
    %2 = vector.multi_reduction <add>, %1, %cst [1] : vector<8x256xf32> to vector<8xf32>
    %3 = vector.shape_cast %2 : vector<8xf32> to vector<8x1xf32>
    %cst_1 = arith.constant 2.560000e+02 : f32
    %4 = vector.broadcast %cst_1 : f32 to vector<8x1xf32>
    %5 = arith.divf %3, %4 : vector<8x1xf32>
    %6 = vector.broadcast %5 : vector<8x1xf32> to vector<8x256xf32>
    %7 = arith.subf %1, %6 : vector<8x256xf32>
    %8 = arith.mulf %7, %7 : vector<8x256xf32>
    %cst_2 = arith.constant dense<0.000000e+00> : vector<8xf32>
    %9 = vector.multi_reduction <add>, %8, %cst_2 [1] : vector<8x256xf32> to vector<8xf32>
    %10 = vector.shape_cast %9 : vector<8xf32> to vector<8x1xf32>
    %cst_3 = arith.constant 2.560000e+02 : f32
    %11 = vector.broadcast %cst_3 : f32 to vector<8x1xf32>
    %12 = arith.divf %10, %11 : vector<8x1xf32>
    %cst_4 = arith.constant 9.99999974E-6 : f32
    %13 = vector.broadcast %cst_4 : f32 to vector<8x1xf32>
    %14 = arith.addf %12, %13 : vector<8x1xf32>
    %15 = math.rsqrt %14 : vector<8x1xf32>
    %16 = vector.broadcast %15 : vector<8x1xf32> to vector<8x256xf32>
    %17 = arith.mulf %7, %16 : vector<8x256xf32>
    %18 = arith.truncf %17 : vector<8x256xf32> to vector<8x256xbf16>
    %c0_5 = arith.constant 0 : index
    %c0_6 = arith.constant 0 : index
    %19 = vector.load %arg2[%c0_5, %c0_6] : memref<256x128xbf16, #tpu.memory_space<vmem>>, vector<256x128xbf16>
    %cst_7 = arith.constant dense<0.000000e+00> : vector<8x128xf32>
    %20 = tpu.matmul %18, %19, %cst_7 {dimension_numbers = #tpu.dot_dimension_numbers<[1], [0], [0], [1], [0, 0, 1, 1], [], []>} : vector<8x256xbf16>, vector<256x128xbf16>, vector<8x128xf32> -> vector<8x128xf32>
    %c0_8 = arith.constant 0 : index
    %c0_9 = arith.constant 0 : index
    %21 = vector.load %arg3[%c0_8, %c0_9] : memref<1x128xf32, #tpu.memory_space<vmem>>, vector<1x128xf32>
    %22 = vector.broadcast %21 : vector<1x128xf32> to vector<8x128xf32>
    %23 = arith.addf %20, %22 : vector<8x128xf32>
    %cst_10 = arith.constant dense<0.000000e+00> : vector<8xf32>
    %24 = vector.multi_reduction <add>, %23, %cst_10 [1] : vector<8x128xf32> to vector<8xf32>
    %25 = vector.shape_cast %24 : vector<8xf32> to vector<8x1xf32>
    %cst_11 = arith.constant 1.280000e+02 : f32
    %26 = vector.broadcast %cst_11 : f32 to vector<8x1xf32>
    %27 = arith.divf %25, %26 : vector<8x1xf32>
    %28 = vector.broadcast %27 : vector<8x1xf32> to vector<8x128xf32>
    %29 = arith.subf %23, %28 : vector<8x128xf32>
    %30 = arith.mulf %29, %29 : vector<8x128xf32>
    %cst_12 = arith.constant dense<0.000000e+00> : vector<8xf32>
    %31 = vector.multi_reduction <add>, %30, %cst_12 [1] : vector<8x128xf32> to vector<8xf32>
    %32 = vector.shape_cast %31 : vector<8xf32> to vector<8x1xf32>
    %cst_13 = arith.constant 1.280000e+02 : f32
    %33 = vector.broadcast %cst_13 : f32 to vector<8x1xf32>
    %34 = arith.divf %32, %33 : vector<8x1xf32>
    %cst_14 = arith.constant 9.99999974E-6 : f32
    %35 = vector.broadcast %cst_14 : f32 to vector<8x1xf32>
    %36 = arith.addf %34, %35 : vector<8x1xf32>
    %37 = math.rsqrt %36 : vector<8x1xf32>
    %38 = vector.broadcast %37 : vector<8x1xf32> to vector<8x128xf32>
    %39 = arith.mulf %29, %38 : vector<8x128xf32>
    %c0_15 = arith.constant 0 : index
    %c0_16 = arith.constant 0 : index
    %40 = vector.load %arg4[%c0_15, %c0_16] : memref<1x128xf32, #tpu.memory_space<vmem>>, vector<1x128xf32>
    %41 = vector.broadcast %40 : vector<1x128xf32> to vector<8x128xf32>
    %42 = arith.mulf %39, %41 : vector<8x128xf32>
    %c0_17 = arith.constant 0 : index
    %c0_18 = arith.constant 0 : index
    %43 = vector.load %arg5[%c0_17, %c0_18] : memref<1x128xf32, #tpu.memory_space<vmem>>, vector<1x128xf32>
    %44 = vector.broadcast %43 : vector<1x128xf32> to vector<8x128xf32>
    %45 = arith.addf %42, %44 : vector<8x128xf32>
    %c0_19 = arith.constant 0 : index
    %c0_20 = arith.constant 0 : index
    %46 = vector.load %arg6[%c0_19, %c0_20] : memref<8x128xf32, #tpu.memory_space<vmem>>, vector<8x128xf32>
    tpu.vector_store %arg6[%c0_19, %c0_20], %45 {strides = array<i32>} : memref<8x128xf32, #tpu.memory_space<vmem>>, vector<8x128xf32>,
    return
  }
  func.func @transform_0(%arg0: i32) -> (i32, i32) {
    %c0_i32 = arith.constant 0 : i32
    %c0_i32_0 = arith.constant 0 : i32
    return %arg0, %c0_i32 : i32, i32
  }
  func.func @transform_1(%arg0: i32) -> (i32, i32) {
    %c0_i32 = arith.constant 0 : i32
    %c0_i32_0 = arith.constant 0 : i32
    %c0_i32_1 = arith.constant 0 : i32
    return %c0_i32, %c0_i32_0 : i32, i32
  }
  func.func @transform_2(%arg0: i32) -> (i32, i32) {
    %c0_i32 = arith.constant 0 : i32
    %c0_i32_0 = arith.constant 0 : i32
    %c0_i32_1 = arith.constant 0 : i32
    return %c0_i32, %c0_i32_0 : i32, i32
  }
  func.func @transform_3(%arg0: i32) -> (i32, i32) {
    %c0_i32 = arith.constant 0 : i32
    %c0_i32_0 = arith.constant 0 : i32
    %c0_i32_1 = arith.constant 0 : i32
    return %c0_i32, %c0_i32_0 : i32, i32
  }
  func.func @transform_4(%arg0: i32) -> (i32, i32) {
    %c0_i32 = arith.constant 0 : i32
    %c0_i32_0 = arith.constant 0 : i32
    %c0_i32_1 = arith.constant 0 : i32
    return %c0_i32, %c0_i32_0 : i32, i32
  }
  func.func @transform_5(%arg0: i32) -> (i32, i32) {
    %c0_i32 = arith.constant 0 : i32
    %c0_i32_0 = arith.constant 0 : i32
    return %arg0, %c0_i32 : i32, i32
  }
}

</mosaic_0001>

<llo_original>
// kernel: patch_embedding.1
$region0: #{patch_embedding.1}
  #allocation0 [shape = 'u32[]', space=smem, size = 0x4, offset = 0x4, fixed_abs, tag = 'smem constant byte address 0x4 - core index']
  #allocation1 [shape = 'u32[72,128]{1,0:T(1,128)}', space=vmem, size = 0x9000, scoped, tag = 'internal scratch']
  %s0 = inlined_call_operand.vmem [shape: bf16[8,256], index: 0, kind: input, shape index: {}]
  %s1 = inlined_call_operand.vmem [shape: bf16[256,128], index: 1, kind: input, shape index: {}]
  %s2 = inlined_call_operand.vmem [shape: f32[1,128], index: 2, kind: input, shape index: {}]
  %s3 = inlined_call_operand.vmem [shape: f32[1,128], index: 3, kind: input, shape index: {}]
  %s4 = inlined_call_operand.vmem [shape: f32[1,128], index: 4, kind: input, shape index: {}]
  %s5 = inlined_call_operand.hbm [shape: f32[8,128], index: 5, kind: output, shape index: {}]
  %s6 = sld [smem:[#allocation0]]
  $region30: #{patch_embedding.1} parent=0
    _
  %s8 = ssub.s32 1, %s6
  %s9 = scalar_select 0, %s8, %s6
  $region1: #{patch_embedding.1} parent=0
    #allocation2 [shape = 'u8[4096]{0}', space=vmem, size = 0x1000, scoped, tag = 'output window, operand 0, single buffered']
    #allocation3 [shape = 's32[1]{0}', space=sflag, size = 0x4, scoped, tag = 'scoped memory for patch_embedding.1']
    %10 = vsyncpa [#allocation3], 0
    // Predicated region
    $region2: #{patch_embedding.1} parent=1 // pred_check
      _
    $region3: #{patch_embedding.1} parent=1 // pred_check_branch
      %12 = sbr.rel (0) target = $region5
    $region4: #{patch_embedding.1} parent=1 // pred_region
      _
    $region5: #{patch_embedding.1} parent=1 // pred_fallthru
      _
    // Predicated region
    $region6: #{patch_embedding.1} parent=1 // pred_check
      _
    $region7: #{patch_embedding.1} parent=1 // pred_check_branch
      %14 = sbr.rel (0) target = $region9
    $region8: #{patch_embedding.1} parent=1 // pred_region
      _
    $region9: #{patch_embedding.1} parent=1 // pred_fallthru
      _
    // Predicated region
    $region10: #{patch_embedding.1} parent=1 // pred_check
      _
    $region11: #{patch_embedding.1} parent=1 // pred_check_branch
      %16 = sbr.rel (0) target = $region13
    $region12: #{patch_embedding.1} parent=1 // pred_region
      _
    $region13: #{patch_embedding.1} parent=1 // pred_fallthru
      _
    // Predicated region
    $region14: #{patch_embedding.1} parent=1 // pred_check
      _
    $region15: #{patch_embedding.1} parent=1 // pred_check_branch
      %18 = sbr.rel (0) target = $region17
    $region16: #{patch_embedding.1} parent=1 // pred_region
      _
    $region17: #{patch_embedding.1} parent=1 // pred_fallthru
      _
    // Predicated region
    $region18: #{patch_embedding.1} parent=1 // pred_check
      _
    $region19: #{patch_embedding.1} parent=1 // pred_check_branch
      %20 = sbr.rel (0) target = $region21
    $region20: #{patch_embedding.1} parent=1 // pred_region
      _
    $region21: #{patch_embedding.1} parent=1 // pred_fallthru
      _
    %v21 = vld [vmem:[%s0] sm:$0xff]
    %v22 = vunpack.c.l.bf16 %v21
    %v23 = vunpack.c.h.bf16 %v21
    %v24 = vadd.f32 %v22, %v23
    %25 = vadd.xlane.f32.xlu0 %v24
    %v26 = vpop.xlane.xlu0 %25
    %v27 = vrcp.pop 256.0
    %v28 = vmul.f32 256.0, %v27
    %v29 = vsub.f32 1.0, %v28
    %v30 = vmul.f32 %v27, %v29
    %v31 = vadd.f32 %v27, %v30
    %vm32 = vweird.f32 %v27
    %v33 = vsel %vm32, %v27, %v31
    %v34 = vmul.f32 %v26, %v33
    %v35 = vsub.f32 %v22, %v34
    %v36 = vsub.f32 %v23, %v34
    %v37 = vmul.f32 %v35, %v35
    %v38 = vmul.f32 %v36, %v36
    %v39 = vadd.f32 %v37, %v38
    %40 = vadd.xlane.f32.xlu0 %v39
    %v41 = vpop.xlane.xlu0 %40
    %v42 = vmul.f32 %v41, %v33
    %v43 = vadd.f32 %v42, 1e-05
    %v44 = vrsqrt.pop %v43
    %v45 = vmul.f32 %v44, %v43
    %v46 = vmul.f32 %v45, %v44
    %v47 = vmul.f32 0.5, %v46
    %v48 = vsub.f32 1.5, %v47
    %v49 = vmul.f32 %v44, %v48
    %vm50 = vweird.f32 %v43
    %vm51 = vweird.f32 %v44
    %vm52 = vmor %vm50, %vm51
    %v53 = vsel %vm52, %v44, %v49
    %v54 = vmul.f32 %v35, %v53
    %v55 = vmul.f32 %v36, %v53
    %v56 = vpack.c.bf16 %v54, %v54
    %v57 = vpack.c.bf16 %v55, %v55
    %v58 = vld [vmem:[%s1] sm:$0xf]
    %v59 = vld [vmem:[%s1 + $0x4] sm:$0xf]
    %v60 = vld [vmem:[%s1 + $0x8] sm:$0xf]
    %v61 = vld [vmem:[%s1 + $0xc] sm:$0xf]
    %v62 = vld [vmem:[%s1 + $0x10] sm:$0xf]
    %v63 = vld [vmem:[%s1 + $0x14] sm:$0xf]
    %v64 = vld [vmem:[%s1 + $0x18] sm:$0xf]
    %v65 = vld [vmem:[%s1 + $0x1c] sm:$0xf]
    %v66 = vld [vmem:[%s1 + $0x20] sm:$0xf]
    %v67 = vld [vmem:[%s1 + $0x24] sm:$0xf]
    %v68 = vld [vmem:[%s1 + $0x28] sm:$0xf]
    %v69 = vld [vmem:[%s1 + $0x2c] sm:$0xf]
    %v70 = vld [vmem:[%s1 + $0x30] sm:$0xf]
    %v71 = vld [vmem:[%s1 + $0x34] sm:$0xf]
    %v72 = vld [vmem:[%s1 + $0x38] sm:$0xf]
    %v73 = vld [vmem:[%s1 + $0x3c] sm:$0xf]
    %v74 = vld [vmem:[%s1 + $0x40] sm:$0xf]
    %v75 = vld [vmem:[%s1 + $0x44] sm:$0xf]
    %v76 = vld [vmem:[%s1 + $0x48] sm:$0xf]
    %v77 = vld [vmem:[%s1 + $0x4c] sm:$0xf]
    %v78 = vld [vmem:[%s1 + $0x50] sm:$0xf]
    %v79 = vld [vmem:[%s1 + $0x54] sm:$0xf]
    %v80 = vld [vmem:[%s1 + $0x58] sm:$0xf]
    %v81 = vld [vmem:[%s1 + $0x5c] sm:$0xf]
    %v82 = vld [vmem:[%s1 + $0x60] sm:$0xf]
    %v83 = vld [vmem:[%s1 + $0x64] sm:$0xf]
    %v84 = vld [vmem:[%s1 + $0x68] sm:$0xf]
    %v85 = vld [vmem:[%s1 + $0x6c] sm:$0xf]
    %v86 = vld [vmem:[%s1 + $0x70] sm:$0xf]
    %v87 = vld [vmem:[%s1 + $0x74] sm:$0xf]
    %v88 = vld [vmem:[%s1 + $0x78] sm:$0xf]
    %v89 = vld [vmem:[%s1 + $0x7c] sm:$0xf]
    %v90 = vld [vmem:[%s2] sm:$0x1]
    %v92 = vperm.slane %v90, 0
    %v126 = vunpack.c.l.b16 %v58
    %v127 = vunpack.c.l.b16 %v59
    %v128 = vunpack.c.l.b16 %v60
    %v129 = vunpack.c.l.b16 %v61
    %v130 = vunpack.c.l.b16 %v62
    %v131 = vunpack.c.l.b16 %v63
    %v132 = vunpack.c.l.b16 %v64
    %v133 = vunpack.c.l.b16 %v65
    %v134 = vunpack.c.l.b16 %v66
    %v135 = vunpack.c.l.b16 %v67
    %v136 = vunpack.c.l.b16 %v68
    %v137 = vunpack.c.l.b16 %v69
    %v138 = vunpack.c.l.b16 %v70
    %v139 = vunpack.c.l.b16 %v71
    %v140 = vunpack.c.l.b16 %v72
    %v141 = vunpack.c.l.b16 %v73
    %v142 = vunpack.c.l.b16 %v74
    %v143 = vunpack.c.l.b16 %v75
    %v144 = vunpack.c.l.b16 %v76
    %v145 = vunpack.c.l.b16 %v77
    %v146 = vunpack.c.l.b16 %v78
    %v147 = vunpack.c.l.b16 %v79
    %v148 = vunpack.c.l.b16 %v80
    %v149 = vunpack.c.l.b16 %v81
    %v150 = vunpack.c.l.b16 %v82
    %v151 = vunpack.c.l.b16 %v83
    %v152 = vunpack.c.l.b16 %v84
    %v153 = vunpack.c.l.b16 %v85
    %v154 = vunpack.c.l.b16 %v86
    %v155 = vunpack.c.l.b16 %v87
    %v156 = vunpack.c.l.b16 %v88
    %v157 = vunpack.c.l.b16 %v89
    %v158 = vpack.c.b16 %v127, %v126
    %v159 = vpack.c.b16 %v129, %v128
    %v160 = vpack.c.b16 %v131, %v130
    %v161 = vpack.c.b16 %v133, %v132
    %v162 = vpack.c.b16 %v135, %v134
    %v163 = vpack.c.b16 %v137, %v136
    %v164 = vpack.c.b16 %v139, %v138
    %v165 = vpack.c.b16 %v141, %v140
    %v166 = vpack.c.b16 %v143, %v142
    %v167 = vpack.c.b16 %v145, %v144
    %v168 = vpack.c.b16 %v147, %v146
    %v169 = vpack.c.b16 %v149, %v148
    %v170 = vpack.c.b16 %v151, %v150
    %v171 = vpack.c.b16 %v153, %v152
    %v172 = vpack.c.b16 %v155, %v154
    %v173 = vpack.c.b16 %v157, %v156
    %190 = vmatpush.bf16.msra.mxu0 %v165
    %191 = vmatpush.bf16.msra.mxu0 %v164
    %192 = vmatpush.bf16.msra.mxu0 %v163
    %193 = vmatpush.bf16.msra.mxu0 %v162
    %194 = vmatpush.bf16.msra.mxu0 %v161
    %195 = vmatpush.bf16.msra.mxu0 %v160
    %196 = vmatpush.bf16.msra.mxu0 %v159
    %197 = vmatpush.bf16.msra.mxu0 %v158
    %198 = vmatmul.bf16.gmra.mxu0 %v56
    %v199 = vpop.f32.mrf.mxu0
    %v200 = vadd.f32 %v92, %v199
    %v201 = vpop.f32.mrf.mxu0
    %202 = vdwg.mxu0
    %203 = vmatpush.bf16.msra.mxu0 %v173
    %204 = vmatpush.bf16.msra.mxu0 %v172
    %205 = vmatpush.bf16.msra.mxu0 %v171
    %206 = vmatpush.bf16.msra.mxu0 %v170
    %207 = vmatpush.bf16.msra.mxu0 %v169
    %208 = vmatpush.bf16.msra.mxu0 %v168
    %209 = vmatpush.bf16.msra.mxu0 %v167
    %210 = vmatpush.bf16.msra.mxu0 %v166
    %211 = vmatmul.bf16.gmra.mxu0 %v57
    %v212 = vpop.f32.mrf.mxu0
    %v213 = vadd.f32 %v200, %v212
    %v214 = vpop.f32.mrf.mxu0
    %215 = vdwg.mxu0
    %216 = vadd.xlane.f32.xlu0 %v213
    %v217 = vpop.xlane.xlu0 %216
    %v218 = vrcp.pop 128.0
    %v219 = vmul.f32 128.0, %v218
    %v220 = vsub.f32 1.0, %v219
    %v221 = vmul.f32 %v218, %v220
    %v222 = vadd.f32 %v218, %v221
    %vm223 = vweird.f32 %v218
    %v224 = vsel %vm223, %v218, %v222
    %v225 = vmul.f32 %v217, %v224
    %v226 = vsub.f32 %v213, %v225
    %v227 = vmul.f32 %v226, %v226
    %228 = vadd.xlane.f32.xlu0 %v227
    %v229 = vpop.xlane.xlu0 %228
    %v230 = vmul.f32 %v229, %v224
    %v231 = vadd.f32 %v230, 1e-05
    %v232 = vrsqrt.pop %v231
    %v233 = vmul.f32 %v232, %v231
    %v234 = vmul.f32 %v233, %v232
    %v235 = vmul.f32 0.5, %v234
    %v236 = vsub.f32 1.5, %v235
    %v237 = vmul.f32 %v232, %v236
    %vm238 = vweird.f32 %v231
    %vm239 = vweird.f32 %v232
    %vm240 = vmor %vm238, %vm239
    %v241 = vsel %vm240, %v232, %v237
    %v242 = vmul.f32 %v226, %v241
    %v243 = vld [vmem:[%s3] sm:$0x1]
    %v245 = vperm.slane %v243, 0
    %v247 = vmul.f32 %v242, %v245
    %v248 = vld [vmem:[%s4] sm:$0x1]
    %v250 = vperm.slane %v248, 0
    %v252 = vadd.f32 %v247, %v250
    %253 = vst [vmem:[#allocation2] sm:$0xff] %v252
    // Predicated region
    $region22: #{patch_embedding.1} parent=1 // pred_check
      _
    $region23: #{patch_embedding.1} parent=1 // pred_check_branch
      %255 = sbr.rel (0) target = $region25
    $region24: #{patch_embedding.1} parent=1 // pred_region
      %257 = vsyncadd [#allocation3], 0
      %s259 = sshll.u32 [#allocation2], 4
      %s260 = int_to_ptr.vmem [resolvable:$true] %s259
      %s261 = sshll.u32 %s5, 4
      %s262 = int_to_ptr.hbm [resolvable:$true] %s261
      %264 = dma.vmem_to_hbm [thread:$0]  %s260, 128, %s262, [#allocation3]
    $region25: #{patch_embedding.1} parent=1 // pred_fallthru
      _
    // Predicated region
    $region26: #{patch_embedding.1} parent=1 // pred_check
      _
    $region27: #{patch_embedding.1} parent=1 // pred_check_branch
      %266 = sbr.rel (0) target = $region29
    $region28: #{patch_embedding.1} parent=1 // pred_region
      %268 = dma.done [#allocation3], 128
    $region29: #{patch_embedding.1} parent=1 // pred_fallthru
      _
    %269 = vsyncpa [#allocation3], 1

</llo_original>
